<compile_context>
chip_gen: v6e
topology: v6e:2x2x1
jax: 0.10.0
libtpu: 0.0.40
codegen_flags: <defaults>
</compile_context>

<pallas_src>
import functools
import numpy as np
import jax
import jax.numpy as jnp
from jax import lax
from jax.experimental import pallas as pl
from jax.experimental.pallas import tpu as pltpu


# ----------------------------------------------------------------------------
# Pallas kernel: fused (in-VMEM im2col via lane rolls) conv3x3 + bias + tanh
# ----------------------------------------------------------------------------
def _offset_kernel(w_ref, b_ref, col_ref, x_ref, o_ref, *,
                   height, width, offset_range):
    # w_ref:   (9, Cout, Cin)   per-tap weight matrices, t = kh*3 + kw
    # b_ref:   (Cout, 1)        conv bias (f32)
    # col_ref: (1, HW) int32    pixel column index (w = p % W), precomputed
    # x_ref:   (1, Cin, HW)     one flattened image (lanes = pixels)
    # o_ref:   (1, Cout, HW)    output block
    cin = x_ref.shape[1]
    hw = x_ref.shape[2]
    cout = b_ref.shape[0]

    x = x_ref[0]                                              # (Cin, HW)
    col = col_ref[...]                                        # (1, HW)
    pidx = lax.broadcasted_iota(jnp.int32, (1, hw), 1)        # flattened pixel idx

    # Zero-padding validity masks for shifted taps.
    row_up_ok = pidx >= width                                 # h-1 >= 0
    row_dn_ok = pidx < (height - 1) * width                   # h+1 <= H-1
    col_lt_ok = col != 0                                      # w-1 >= 0
    col_rt_ok = col != (width - 1)                            # w+1 <= W-1

    acc = jnp.zeros((cout, hw), jnp.float32)
    for kh in range(3):
        dh = kh - 1
        for kw in range(3):
            dw = kw - 1
            t = kh * 3 + kw
            d = dh * width + dw                               # flattened tap offset
            # tap[c, p] = x[c, p + d]  (wrap garbage is masked away below)
            tap = x if d == 0 else pltpu.roll(x, shift=(-d) % hw, axis=1)
            mask = None
            if dh == -1:
                mask = row_up_ok
            elif dh == 1:
                mask = row_dn_ok
            if dw == -1:
                mask = col_lt_ok if mask is None else (mask & col_lt_ok)
            elif dw == 1:
                mask = col_rt_ok if mask is None else (mask & col_rt_ok)
            if mask is not None:
                tap = jnp.where(mask, tap, 0.0)
            acc = acc + jnp.dot(w_ref[t], tap,
                                preferred_element_type=jnp.float32)

    y = acc + b_ref[...]                                      # bias broadcast
    # offset_range * (2*sigmoid(y) - 1) == offset_range * tanh(y/2)  (EUP op)
    o_ref[0, :, :] = (offset_range * jnp.tanh(0.5 * y)).astype(o_ref.dtype)


def offset_layer_pallas(x, w, b, offset_range, *, compute_dtype=jnp.float32):
    """x: (N, Cin, H, W); w: (Cout, Cin, 3, 3); b: (Cout,).

    Returns (N, Cout, H, W) f32 — identical semantics to the PyTorch module.
    """
    n, cin, h, wid = x.shape
    cout = w.shape[0]
    hw = h * wid

    # Free reshape (merges trailing dims); optional bf16 cast halves the read.
    x_flat = x.reshape(n, cin, hw).astype(compute_dtype)
    # (Cout, Cin, 3, 3) -> (9, Cout, Cin), tap index t = kh*3 + kw.
    w_taps = jnp.transpose(w, (2, 3, 0, 1)).reshape(9, cout, cin).astype(compute_dtype)
    b_mat = b.reshape(cout, 1).astype(jnp.float32)
    # Pixel column index; shipped (tiny, resident) to avoid vector int-mod in-kernel.
    colmap = (jnp.arange(hw, dtype=jnp.int32) % wid).reshape(1, hw)

    # VMEM budget: 2x (double-buffered) input image + 2x output block + temps.
    itemsize = jnp.dtype(compute_dtype).itemsize
    img_in = cin * hw * itemsize
    img_out = cout * hw * 4
    needed = 2 * img_in + 2 * img_out + 6 * cin * hw * 4 + (1 << 20)
    vmem_limit = int(min(max(needed, 16 * 2**20), 48 * 2**20))

    cost = pl.CostEstimate(
        flops=2 * n * cout * 9 * cin * hw,
        transcendentals=n * cout * hw,
        bytes_accessed=(n * img_in + n * img_out
                        + w_taps.size * itemsize + b_mat.size * 4
                        + colmap.size * 4))

    kernel = functools.partial(_offset_kernel, height=h, width=wid,
                               offset_range=float(offset_range))
    out = pl.pallas_call(
        kernel,
        out_shape=jax.ShapeDtypeStruct((n, cout, hw), jnp.float32),
        grid=(n,),
        in_specs=[
            pl.BlockSpec((9, cout, cin), lambda i: (0, 0, 0)),  # weights (resident)
            pl.BlockSpec((cout, 1), lambda i: (0, 0)),          # bias (resident)
            pl.BlockSpec((1, hw), lambda i: (0, 0)),            # column idx (resident)
            pl.BlockSpec((1, cin, hw), lambda i: (i, 0, 0)),    # one image / step
        ],
        out_specs=pl.BlockSpec((1, cout, hw), lambda i: (i, 0, 0)),
        compiler_params=pltpu.CompilerParams(
            dimension_semantics=("parallel",),
            vmem_limit_bytes=vmem_limit),
        cost_estimate=cost,
    )(w_taps, b_mat, colmap, x_flat)

    return out.reshape(n, cout, h, wid)


# ----------------------------------------------------------------------------
# Pure-JAX reference (PyTorch semantics) for the self-check
# ----------------------------------------------------------------------------
def offset_layer_ref(x, w, b, offset_range):
    y = jax.lax.conv_general_dilated(
        x, w, window_strides=(1, 1), padding=((1, 1), (1, 1)),
        dimension_numbers=("NCHW", "OIHW", "NCHW"))
    y = y + b.reshape(1, -1, 1, 1)
    return offset_range * (2.0 * jax.nn.sigmoid(y) - 1.0)


# ----------------------------------------------------------------------------
if __name__ == "__main__":
    key = jax.random.PRNGKey(0)
    k_x, k_w, k_b = jax.random.split(key, 3)

    batch, dim_in, H, W = 2, 4, 16, 16
    offset_range = 4.0

    x = jax.random.normal(k_x, (batch, dim_in, H, W), jnp.float32)
    w_conv = 0.1 * jax.random.normal(k_w, (2, dim_in, 3, 3), jnp.float32)
    b_conv = 0.1 * jax.random.normal(k_b, (2,), jnp.float32)

    fwd = jax.jit(functools.partial(offset_layer_pallas,
                                    offset_range=offset_range))
    out = jax.block_until_ready(fwd(x, w_conv, b_conv))

    assert out.shape == (batch, 2, H, W), out.shape

    ref = offset_layer_ref(x, w_conv, b_conv, offset_range)
    np.testing.assert_allclose(np.asarray(out), np.asarray(ref),
                               rtol=2e-3, atol=2e-3)
    print("KERNEL_OK")
</pallas_src>

<mosaic_0001>
module attributes {stable_mosaic.version = 11 : i64} {
  func.func @_offset_kernel(%arg0: i32, %arg1: memref<9x2x4xf32, #tpu.memory_space<vmem>>, %arg2: memref<2x1xf32, #tpu.memory_space<vmem>>, %arg3: memref<1x256xi32, #tpu.memory_space<vmem>>, %arg4: memref<1x4x256xf32, #tpu.memory_space<vmem>>, %arg5: memref<1x2x256xf32, #tpu.memory_space<vmem>>) attributes {dimension_semantics = [#tpu.dimension_semantics<parallel>], iteration_bounds = array<i64: 2>, scalar_prefetch = 0 : i64, scratch_operands = 0 : i64, tpu.core_type = #tpu.core_type<tc>, window_params = [{pipeline_mode = #tpu.pipeline_mode<synchronous>, transform_indices = @transform_0, window_bounds = array<i64: 9, 2, 4>}, {pipeline_mode = #tpu.pipeline_mode<synchronous>, transform_indices = @transform_1, window_bounds = array<i64: 2, 1>}, {pipeline_mode = #tpu.pipeline_mode<synchronous>, transform_indices = @transform_2, window_bounds = array<i64: 1, 256>}, {transform_indices = @transform_3, window_bounds = array<i64: 1, 4, 256>}, {transform_indices = @transform_4, window_bounds = array<i64: 1, 2, 256>}]} {
    %c0 = arith.constant 0 : index
    %c0_0 = arith.constant 0 : index
    %c0_1 = arith.constant 0 : index
    %0 = vector.load %arg4[%c0, %c0_0, %c0_1] : memref<1x4x256xf32, #tpu.memory_space<vmem>>, vector<1x4x256xf32>
    %1 = vector.shape_cast %0 : vector<1x4x256xf32> to vector<4x256xf32>
    %c0_2 = arith.constant 0 : index
    %c0_3 = arith.constant 0 : index
    %2 = vector.load %arg3[%c0_2, %c0_3] : memref<1x256xi32, #tpu.memory_space<vmem>>, vector<1x256xi32>
    %3 = tpu.iota {dimensions = array<i32: 1>} : vector<1x256xi32>
    %c16_i32 = arith.constant 16 : i32
    %4 = vector.broadcast %c16_i32 : i32 to vector<1x256xi32>
    %5 = arith.cmpi sge, %3, %4 : vector<1x256xi32>
    %c240_i32 = arith.constant 240 : i32
    %6 = vector.broadcast %c240_i32 : i32 to vector<1x256xi32>
    %7 = arith.cmpi slt, %3, %6 : vector<1x256xi32>
    %c0_i32 = arith.constant 0 : i32
    %8 = vector.broadcast %c0_i32 : i32 to vector<1x256xi32>
    %9 = arith.cmpi ne, %2, %8 : vector<1x256xi32>
    %c15_i32 = arith.constant 15 : i32
    %10 = vector.broadcast %c15_i32 : i32 to vector<1x256xi32>
    %11 = arith.cmpi ne, %2, %10 : vector<1x256xi32>
    %cst = arith.constant 0.000000e+00 : f32
    %12 = vector.broadcast %cst : f32 to vector<2x256xf32>
    %c17_i32 = arith.constant 17 : i32
    %13 = tpu.dynamic_rotate %1 by %c17_i32 dim 1 : vector<4x256xf32>, i32 -> vector<4x256xf32>
    %14 = arith.andi %5, %9 : vector<1x256xi1>
    %cst_4 = arith.constant 0.000000e+00 : f32
    %15 = vector.shape_cast %14 : vector<1x256xi1> to vector<1x256xi1>
    %16 = vector.broadcast %15 : vector<1x256xi1> to vector<4x256xi1>
    %17 = vector.broadcast %cst_4 : f32 to vector<4x256xf32>
    %18 = arith.select %16, %13, %17 : vector<4x256xi1>, vector<4x256xf32>
    %c0_5 = arith.constant 0 : index
    %c0_6 = arith.constant 0 : index
    %c0_7 = arith.constant 0 : index
    %19 = vector.load %arg1[%c0_5, %c0_6, %c0_7] : memref<9x2x4xf32, #tpu.memory_space<vmem>>, vector<1x2x4xf32>
    %20 = vector.shape_cast %19 : vector<1x2x4xf32> to vector<2x4xf32>
    %cst_8 = arith.constant dense<0.000000e+00> : vector<2x256xf32>
    %21 = tpu.matmul %20, %18, %cst_8 {dimension_numbers = #tpu.dot_dimension_numbers<[1], [0], [0], [1], [0, 0, 1, 1], [], []>} : vector<2x4xf32>, vector<4x256xf32>, vector<2x256xf32> -> vector<2x256xf32>
    %22 = arith.addf %12, %21 : vector<2x256xf32>
    %c16_i32_9 = arith.constant 16 : i32
    %23 = tpu.dynamic_rotate %1 by %c16_i32_9 dim 1 : vector<4x256xf32>, i32 -> vector<4x256xf32>
    %cst_10 = arith.constant 0.000000e+00 : f32
    %24 = vector.shape_cast %5 : vector<1x256xi1> to vector<1x256xi1>
    %25 = vector.broadcast %24 : vector<1x256xi1> to vector<4x256xi1>
    %26 = vector.broadcast %cst_10 : f32 to vector<4x256xf32>
    %27 = arith.select %25, %23, %26 : vector<4x256xi1>, vector<4x256xf32>
    %c1 = arith.constant 1 : index
    %c0_11 = arith.constant 0 : index
    %c0_12 = arith.constant 0 : index
    %28 = vector.load %arg1[%c1, %c0_11, %c0_12] : memref<9x2x4xf32, #tpu.memory_space<vmem>>, vector<1x2x4xf32>
    %29 = vector.shape_cast %28 : vector<1x2x4xf32> to vector<2x4xf32>
    %cst_13 = arith.constant dense<0.000000e+00> : vector<2x256xf32>
    %30 = tpu.matmul %29, %27, %cst_13 {dimension_numbers = #tpu.dot_dimension_numbers<[1], [0], [0], [1], [0, 0, 1, 1], [], []>} : vector<2x4xf32>, vector<4x256xf32>, vector<2x256xf32> -> vector<2x256xf32>
    %31 = arith.addf %22, %30 : vector<2x256xf32>
    %c15_i32_14 = arith.constant 15 : i32
    %32 = tpu.dynamic_rotate %1 by %c15_i32_14 dim 1 : vector<4x256xf32>, i32 -> vector<4x256xf32>
    %33 = arith.andi %5, %11 : vector<1x256xi1>
    %cst_15 = arith.constant 0.000000e+00 : f32
    %34 = vector.shape_cast %33 : vector<1x256xi1> to vector<1x256xi1>
    %35 = vector.broadcast %34 : vector<1x256xi1> to vector<4x256xi1>
    %36 = vector.broadcast %cst_15 : f32 to vector<4x256xf32>
    %37 = arith.select %35, %32, %36 : vector<4x256xi1>, vector<4x256xf32>
    %c2 = arith.constant 2 : index
    %c0_16 = arith.constant 0 : index
    %c0_17 = arith.constant 0 : index
    %38 = vector.load %arg1[%c2, %c0_16, %c0_17] : memref<9x2x4xf32, #tpu.memory_space<vmem>>, vector<1x2x4xf32>
    %39 = vector.shape_cast %38 : vector<1x2x4xf32> to vector<2x4xf32>
    %cst_18 = arith.constant dense<0.000000e+00> : vector<2x256xf32>
    %40 = tpu.matmul %39, %37, %cst_18 {dimension_numbers = #tpu.dot_dimension_numbers<[1], [0], [0], [1], [0, 0, 1, 1], [], []>} : vector<2x4xf32>, vector<4x256xf32>, vector<2x256xf32> -> vector<2x256xf32>
    %41 = arith.addf %31, %40 : vector<2x256xf32>
    %c1_i32 = arith.constant 1 : i32
    %42 = tpu.dynamic_rotate %1 by %c1_i32 dim 1 : vector<4x256xf32>, i32 -> vector<4x256xf32>
    %cst_19 = arith.constant 0.000000e+00 : f32
    %43 = vector.shape_cast %9 : vector<1x256xi1> to vector<1x256xi1>
    %44 = vector.broadcast %43 : vector<1x256xi1> to vector<4x256xi1>
    %45 = vector.broadcast %cst_19 : f32 to vector<4x256xf32>
    %46 = arith.select %44, %42, %45 : vector<4x256xi1>, vector<4x256xf32>
    %c3 = arith.constant 3 : index
    %c0_20 = arith.constant 0 : index
    %c0_21 = arith.constant 0 : index
    %47 = vector.load %arg1[%c3, %c0_20, %c0_21] : memref<9x2x4xf32, #tpu.memory_space<vmem>>, vector<1x2x4xf32>
    %48 = vector.shape_cast %47 : vector<1x2x4xf32> to vector<2x4xf32>
    %cst_22 = arith.constant dense<0.000000e+00> : vector<2x256xf32>
    %49 = tpu.matmul %48, %46, %cst_22 {dimension_numbers = #tpu.dot_dimension_numbers<[1], [0], [0], [1], [0, 0, 1, 1], [], []>} : vector<2x4xf32>, vector<4x256xf32>, vector<2x256xf32> -> vector<2x256xf32>
    %50 = arith.addf %41, %49 : vector<2x256xf32>
    %c4 = arith.constant 4 : index
    %c0_23 = arith.constant 0 : index
    %c0_24 = arith.constant 0 : index
    %51 = vector.load %arg1[%c4, %c0_23, %c0_24] : memref<9x2x4xf32, #tpu.memory_space<vmem>>, vector<1x2x4xf32>
    %52 = vector.shape_cast %51 : vector<1x2x4xf32> to vector<2x4xf32>
    %cst_25 = arith.constant dense<0.000000e+00> : vector<2x256xf32>
    %53 = tpu.matmul %52, %1, %cst_25 {dimension_numbers = #tpu.dot_dimension_numbers<[1], [0], [0], [1], [0, 0, 1, 1], [], []>} : vector<2x4xf32>, vector<4x256xf32>, vector<2x256xf32> -> vector<2x256xf32>
    %54 = arith.addf %50, %53 : vector<2x256xf32>
    %c255_i32 = arith.constant 255 : i32
    %55 = tpu.dynamic_rotate %1 by %c255_i32 dim 1 : vector<4x256xf32>, i32 -> vector<4x256xf32>
    %cst_26 = arith.constant 0.000000e+00 : f32
    %56 = vector.shape_cast %11 : vector<1x256xi1> to vector<1x256xi1>
    %57 = vector.broadcast %56 : vector<1x256xi1> to vector<4x256xi1>
    %58 = vector.broadcast %cst_26 : f32 to vector<4x256xf32>
    %59 = arith.select %57, %55, %58 : vector<4x256xi1>, vector<4x256xf32>
    %c5 = arith.constant 5 : index
    %c0_27 = arith.constant 0 : index
    %c0_28 = arith.constant 0 : index
    %60 = vector.load %arg1[%c5, %c0_27, %c0_28] : memref<9x2x4xf32, #tpu.memory_space<vmem>>, vector<1x2x4xf32>
    %61 = vector.shape_cast %60 : vector<1x2x4xf32> to vector<2x4xf32>
    %cst_29 = arith.constant dense<0.000000e+00> : vector<2x256xf32>
    %62 = tpu.matmul %61, %59, %cst_29 {dimension_numbers = #tpu.dot_dimension_numbers<[1], [0], [0], [1], [0, 0, 1, 1], [], []>} : vector<2x4xf32>, vector<4x256xf32>, vector<2x256xf32> -> vector<2x256xf32>
    %63 = arith.addf %54, %62 : vector<2x256xf32>
    %c241_i32 = arith.constant 241 : i32
    %64 = tpu.dynamic_rotate %1 by %c241_i32 dim 1 : vector<4x256xf32>, i32 -> vector<4x256xf32>
    %65 = arith.andi %7, %9 : vector<1x256xi1>
    %cst_30 = arith.constant 0.000000e+00 : f32
    %66 = vector.shape_cast %65 : vector<1x256xi1> to vector<1x256xi1>
    %67 = vector.broadcast %66 : vector<1x256xi1> to vector<4x256xi1>
    %68 = vector.broadcast %cst_30 : f32 to vector<4x256xf32>
    %69 = arith.select %67, %64, %68 : vector<4x256xi1>, vector<4x256xf32>
    %c6 = arith.constant 6 : index
    %c0_31 = arith.constant 0 : index
    %c0_32 = arith.constant 0 : index
    %70 = vector.load %arg1[%c6, %c0_31, %c0_32] : memref<9x2x4xf32, #tpu.memory_space<vmem>>, vector<1x2x4xf32>
    %71 = vector.shape_cast %70 : vector<1x2x4xf32> to vector<2x4xf32>
    %cst_33 = arith.constant dense<0.000000e+00> : vector<2x256xf32>
    %72 = tpu.matmul %71, %69, %cst_33 {dimension_numbers = #tpu.dot_dimension_numbers<[1], [0], [0], [1], [0, 0, 1, 1], [], []>} : vector<2x4xf32>, vector<4x256xf32>, vector<2x256xf32> -> vector<2x256xf32>
    %73 = arith.addf %63, %72 : vector<2x256xf32>
    %c240_i32_34 = arith.constant 240 : i32
    %74 = tpu.dynamic_rotate %1 by %c240_i32_34 dim 1 : vector<4x256xf32>, i32 -> vector<4x256xf32>
    %cst_35 = arith.constant 0.000000e+00 : f32
    %75 = vector.shape_cast %7 : vector<1x256xi1> to vector<1x256xi1>
    %76 = vector.broadcast %75 : vector<1x256xi1> to vector<4x256xi1>
    %77 = vector.broadcast %cst_35 : f32 to vector<4x256xf32>
    %78 = arith.select %76, %74, %77 : vector<4x256xi1>, vector<4x256xf32>
    %c7 = arith.constant 7 : index
    %c0_36 = arith.constant 0 : index
    %c0_37 = arith.constant 0 : index
    %79 = vector.load %arg1[%c7, %c0_36, %c0_37] : memref<9x2x4xf32, #tpu.memory_space<vmem>>, vector<1x2x4xf32>
    %80 = vector.shape_cast %79 : vector<1x2x4xf32> to vector<2x4xf32>
    %cst_38 = arith.constant dense<0.000000e+00> : vector<2x256xf32>
    %81 = tpu.matmul %80, %78, %cst_38 {dimension_numbers = #tpu.dot_dimension_numbers<[1], [0], [0], [1], [0, 0, 1, 1], [], []>} : vector<2x4xf32>, vector<4x256xf32>, vector<2x256xf32> -> vector<2x256xf32>
    %82 = arith.addf %73, %81 : vector<2x256xf32>
    %c239_i32 = arith.constant 239 : i32
    %83 = tpu.dynamic_rotate %1 by %c239_i32 dim 1 : vector<4x256xf32>, i32 -> vector<4x256xf32>
    %84 = arith.andi %7, %11 : vector<1x256xi1>
    %cst_39 = arith.constant 0.000000e+00 : f32
    %85 = vector.shape_cast %84 : vector<1x256xi1> to vector<1x256xi1>
    %86 = vector.broadcast %85 : vector<1x256xi1> to vector<4x256xi1>
    %87 = vector.broadcast %cst_39 : f32 to vector<4x256xf32>
    %88 = arith.select %86, %83, %87 : vector<4x256xi1>, vector<4x256xf32>
    %c8 = arith.constant 8 : index
    %c0_40 = arith.constant 0 : index
    %c0_41 = arith.constant 0 : index
    %89 = vector.load %arg1[%c8, %c0_40, %c0_41] : memref<9x2x4xf32, #tpu.memory_space<vmem>>, vector<1x2x4xf32>
    %90 = vector.shape_cast %89 : vector<1x2x4xf32> to vector<2x4xf32>
    %cst_42 = arith.constant dense<0.000000e+00> : vector<2x256xf32>
    %91 = tpu.matmul %90, %88, %cst_42 {dimension_numbers = #tpu.dot_dimension_numbers<[1], [0], [0], [1], [0, 0, 1, 1], [], []>} : vector<2x4xf32>, vector<4x256xf32>, vector<2x256xf32> -> vector<2x256xf32>
    %92 = arith.addf %82, %91 : vector<2x256xf32>
    %c0_43 = arith.constant 0 : index
    %c0_44 = arith.constant 0 : index
    %93 = vector.load %arg2[%c0_43, %c0_44] : memref<2x1xf32, #tpu.memory_space<vmem>>, vector<2x1xf32>
    %94 = vector.broadcast %93 : vector<2x1xf32> to vector<2x256xf32>
    %95 = arith.addf %92, %94 : vector<2x256xf32>
    %cst_45 = arith.constant 5.000000e-01 : f32
    %96 = vector.broadcast %cst_45 : f32 to vector<2x256xf32>
    %97 = arith.mulf %96, %95 : vector<2x256xf32>
    %98 = math.tanh %97 : vector<2x256xf32>
    %cst_46 = arith.constant 4.000000e+00 : f32
    %99 = vector.broadcast %cst_46 : f32 to vector<2x256xf32>
    %100 = arith.mulf %99, %98 : vector<2x256xf32>
    %c0_47 = arith.constant 0 : index
    %c0_48 = arith.constant 0 : index
    %c0_49 = arith.constant 0 : index
    %101 = vector.load %arg5[%c0_47, %c0_48, %c0_49] : memref<1x2x256xf32, #tpu.memory_space<vmem>>, vector<1x2x256xf32>
    %102 = vector.shape_cast %101 : vector<1x2x256xf32> to vector<2x256xf32>
    %103 = vector.shape_cast %100 : vector<2x256xf32> to vector<1x2x256xf32>
    tpu.vector_store %arg5[%c0_47, %c0_48, %c0_49], %103 {strides = array<i32>} : memref<1x2x256xf32, #tpu.memory_space<vmem>>, vector<1x2x256xf32>,
    return
  }
  func.func @transform_0(%arg0: i32) -> (i32, i32, i32) {
    %c0_i32 = arith.constant 0 : i32
    %c0_i32_0 = arith.constant 0 : i32
    %c0_i32_1 = arith.constant 0 : i32
    %c0_i32_2 = arith.constant 0 : i32
    return %c0_i32, %c0_i32_0, %c0_i32_1 : i32, i32, i32
  }
  func.func @transform_1(%arg0: i32) -> (i32, i32) {
    %c0_i32 = arith.constant 0 : i32
    %c0_i32_0 = arith.constant 0 : i32
    %c0_i32_1 = arith.constant 0 : i32
    return %c0_i32, %c0_i32_0 : i32, i32
  }
  func.func @transform_2(%arg0: i32) -> (i32, i32) {
    %c0_i32 = arith.constant 0 : i32
    %c0_i32_0 = arith.constant 0 : i32
    %c0_i32_1 = arith.constant 0 : i32
    return %c0_i32, %c0_i32_0 : i32, i32
  }
  func.func @transform_3(%arg0: i32) -> (i32, i32, i32) {
    %c0_i32 = arith.constant 0 : i32
    %c0_i32_0 = arith.constant 0 : i32
    %c0_i32_1 = arith.constant 0 : i32
    return %arg0, %c0_i32, %c0_i32_0 : i32, i32, i32
  }
  func.func @transform_4(%arg0: i32) -> (i32, i32, i32) {
    %c0_i32 = arith.constant 0 : i32
    %c0_i32_0 = arith.constant 0 : i32
    %c0_i32_1 = arith.constant 0 : i32
    return %arg0, %c0_i32, %c0_i32_0 : i32, i32, i32
  }
}

</mosaic_0001>

<llo_original>
// kernel: offset_layer_pallas.1
$region0: #{offset_layer_pallas.1}
  #allocation0 [shape = 'u32[]', space=smem, size = 0x4, offset = 0x4, fixed_abs, tag = 'smem constant byte address 0x4 - core index']
  #allocation1 [shape = 'u32[144,128]{1,0:T(1,128)}', space=vmem, size = 0x12000, scoped, tag = 'internal scratch']
  %s0 = inlined_call_operand.vmem [shape: f32[9,2,4], index: 0, kind: input, shape index: {}]
  %s1 = inlined_call_operand.vmem [shape: f32[2,1], index: 1, kind: input, shape index: {}]
  %s2 = inlined_call_operand.vmem [shape: s32[1,256], index: 2, kind: input, shape index: {}]
  %s3 = inlined_call_operand.vmem [shape: f32[2,4,256], index: 3, kind: input, shape index: {}]
  %s4 = inlined_call_operand.vmem [shape: f32[2,2,256], index: 4, kind: output, shape index: {}]
  %s5 = sld [smem:[#allocation0]]
  $region49: #{offset_layer_pallas.1} parent=0
    _
  %s7 = ssub.s32 1, %s5
  %s8 = scalar_select 0, %s7, %s5
  loop: start=0, step=1, limit=4
  $region2: #{offset_layer_pallas.1} parent=0 // loop_pre_header
    _
  $region3: #{offset_layer_pallas.1} parent=0 // loop_header
    %s10 = sphi 0, %s14
    %p11 = scmp.ge.s32.totalorder %s10, 4
    %s18 = sphi 0, %s18
    %s20 = sphi 0, %s18
    %s21 = sphi 0, %s20
    %s35 = sphi 0, %s21
    %s39 = sphi 0, %s39
    %s41 = sphi 0, %s39
    %s42 = sphi 0, %s41
    %s56 = sphi 0, %s42
    %s60 = sphi 0, %s60
    %s62 = sphi 0, %s60
    %s63 = sphi 0, %s62
    %s77 = sphi 0, %s63
    %s83 = sphi 0, %s85
    %s86 = sphi 0, %s83
    %s87 = sphi 0, %s86
    %s103 = sphi 0, %s87
    %s109 = sphi 0, %s111
    %s112 = sphi 0, %s109
    %s113 = sphi 0, %s112
    %s129 = sphi 0, %s113
  $region4: #{offset_layer_pallas.1} parent=0 // loop_header_branch
    %13 = sbr.rel (%p11) target = $region8
  $region5: #{offset_layer_pallas.1} parent=0 // loop_body
    %s15 = ssub.s32 %s10, 1
    %s16 = ssub.s32 %s10, 2
    %s17 = sadd.s32 %s10, 1
    %s19 = sadd.s32 %s18, 1
    %p22 = scmp.eq.s32.totalorder %s10, 1
    %p23 = scmp.ne.s32.totalorder %s18, %s20
    %p24 = scmp.eq.s32.totalorder %s10, 0
    %p25 = por %p23, %p24
    %p26 = scmp.ne.s32.totalorder %s18, %s20
    %p27 = scmp.eq.s32.totalorder %s15, 1
    %p28 = por %p26, %p27
    %p29 = scmp.ne.s32.totalorder %s20, %s21
    %p30 = scmp.eq.s32.totalorder %s15, 0
    %p31 = por %p29, %p30
    %p32 = scmp.ne.s32.totalorder %s20, %s21
    %p33 = scmp.eq.s32.totalorder %s16, 1
    %p34 = por %p32, %p33
    %p36 = scmp.ne.s32.totalorder %s21, %s35
    %p37 = scmp.eq.s32.totalorder %s16, 0
    %p38 = por %p36, %p37
    %s40 = sadd.s32 %s39, 1
    %p43 = scmp.eq.s32.totalorder %s10, 1
    %p44 = scmp.ne.s32.totalorder %s39, %s41
    %p45 = scmp.eq.s32.totalorder %s10, 0
    %p46 = por %p44, %p45
    %p47 = scmp.ne.s32.totalorder %s39, %s41
    %p48 = scmp.eq.s32.totalorder %s15, 1
    %p49 = por %p47, %p48
    %p50 = scmp.ne.s32.totalorder %s41, %s42
    %p51 = scmp.eq.s32.totalorder %s15, 0
    %p52 = por %p50, %p51
    %p53 = scmp.ne.s32.totalorder %s41, %s42
    %p54 = scmp.eq.s32.totalorder %s16, 1
    %p55 = por %p53, %p54
    %p57 = scmp.ne.s32.totalorder %s42, %s56
    %p58 = scmp.eq.s32.totalorder %s16, 0
    %p59 = por %p57, %p58
    %s61 = sadd.s32 %s60, 1
    %p64 = scmp.eq.s32.totalorder %s10, 1
    %p65 = scmp.ne.s32.totalorder %s60, %s62
    %p66 = scmp.eq.s32.totalorder %s10, 0
    %p67 = por %p65, %p66
    %p68 = scmp.ne.s32.totalorder %s60, %s62
    %p69 = scmp.eq.s32.totalorder %s15, 1
    %p70 = por %p68, %p69
    %p71 = scmp.ne.s32.totalorder %s62, %s63
    %p72 = scmp.eq.s32.totalorder %s15, 0
    %p73 = por %p71, %p72
    %p74 = scmp.ne.s32.totalorder %s62, %s63
    %p75 = scmp.eq.s32.totalorder %s16, 1
    %p76 = por %p74, %p75
    %p78 = scmp.ne.s32.totalorder %s63, %s77
    %p79 = scmp.eq.s32.totalorder %s16, 0
    %p80 = por %p78, %p79
    %s81 = ssub.s32 %s10, %s17
    %p82 = scmp.eq.s32.totalorder %s81, 0
    %s84 = sadd.s32 %s83, 1
    %s85 = scalar_select %p82, %s83, %s84
    %p88 = pneg %p82
    %p89 = scmp.eq.s32.totalorder %s10, 1
    %p90 = por %p88, %p89
    %p91 = scmp.ne.s32.totalorder %s83, %s86
    %p92 = scmp.eq.s32.totalorder %s10, 0
    %p93 = por %p91, %p92
    %p94 = scmp.ne.s32.totalorder %s83, %s86
    %p95 = scmp.eq.s32.totalorder %s15, 1
    %p96 = por %p94, %p95
    %p97 = scmp.ne.s32.totalorder %s86, %s87
    %p98 = scmp.eq.s32.totalorder %s15, 0
    %p99 = por %p97, %p98
    %p100 = scmp.ne.s32.totalorder %s86, %s87
    %p101 = scmp.eq.s32.totalorder %s16, 1
    %p102 = por %p100, %p101
    %p104 = scmp.ne.s32.totalorder %s87, %s103
    %p105 = scmp.eq.s32.totalorder %s16, 0
    %p106 = por %p104, %p105
    %s107 = ssub.s32 %s10, %s17
    %p108 = scmp.eq.s32.totalorder %s107, 0
    %s110 = sadd.s32 %s109, 1
    %s111 = scalar_select %p108, %s109, %s110
    %p114 = pneg %p108
    %p115 = scmp.eq.s32.totalorder %s10, 1
    %p116 = por %p114, %p115
    %p117 = scmp.ne.s32.totalorder %s109, %s112
    %p118 = scmp.eq.s32.totalorder %s10, 0
    %p119 = por %p117, %p118
    %p120 = scmp.ne.s32.totalorder %s109, %s112
    %p121 = scmp.eq.s32.totalorder %s15, 1
    %p122 = por %p120, %p121
    %p123 = scmp.ne.s32.totalorder %s112, %s113
    %p124 = scmp.eq.s32.totalorder %s15, 0
    %p125 = por %p123, %p124
    %p126 = scmp.ne.s32.totalorder %s112, %s113
    %p127 = scmp.eq.s32.totalorder %s16, 1
    %p128 = por %p126, %p127
    %p130 = scmp.ne.s32.totalorder %s113, %s129
    %p131 = scmp.eq.s32.totalorder %s16, 0
    %p132 = por %p130, %p131
    %p133 = scmp.le.s32.totalorder 1, %s10
    %p134 = scmp.lt.s32.totalorder %s10, 3
    %p135 = pnand %p133, %p134
    %p136 = pneg %p135
    // Predicated region
    $region9: #{offset_layer_pallas.1} parent=5 // pred_check
      _
    $region10: #{offset_layer_pallas.1} parent=5 // pred_check_branch
      %138 = sbr.rel (%p135) target = $region12
    $region11: #{offset_layer_pallas.1} parent=5 // pred_region
      %s139 = ssub.s32 %s10, 1
      // Predicated region
      $region13: #{offset_layer_pallas.1} parent=11 // pred_check
        %p140 = pneg %p31
      $region14: #{offset_layer_pallas.1} parent=11 // pred_check_branch
        %142 = sbr.rel (%p140) target = $region16
      $region15: #{offset_layer_pallas.1} parent=11 // pred_region
        _
      $region16: #{offset_layer_pallas.1} parent=11 // pred_fallthru
        _
      // Predicated region
      $region17: #{offset_layer_pallas.1} parent=11 // pred_check
        %p143 = pneg %p52
      $region18: #{offset_layer_pallas.1} parent=11 // pred_check_branch
        %145 = sbr.rel (%p143) target = $region20
      $region19: #{offset_layer_pallas.1} parent=11 // pred_region
        _
      $region20: #{offset_layer_pallas.1} parent=11 // pred_fallthru
        _
      // Predicated region
      $region21: #{offset_layer_pallas.1} parent=11 // pred_check
        %p146 = pneg %p73
      $region22: #{offset_layer_pallas.1} parent=11 // pred_check_branch
        %148 = sbr.rel (%p146) target = $region24
      $region23: #{offset_layer_pallas.1} parent=11 // pred_region
        _
      $region24: #{offset_layer_pallas.1} parent=11 // pred_fallthru
        _
    $region12: #{offset_layer_pallas.1} parent=5 // pred_fallthru
      _
    %p149 = scmp.lt.s32.totalorder %s10, 2
    // Predicated region
    $region25: #{offset_layer_pallas.1} parent=5 // pred_check
      %p150 = pneg %p149
    $region26: #{offset_layer_pallas.1} parent=5 // pred_check_branch
      %152 = sbr.rel (%p150) target = $region28
    $region27: #{offset_layer_pallas.1} parent=5 // pred_region
      // Predicated region
      $region29: #{offset_layer_pallas.1} parent=27 // pred_check
        %p153 = pneg %p93
      $region30: #{offset_layer_pallas.1} parent=27 // pred_check_branch
        %155 = sbr.rel (%p153) target = $region32
      $region31: #{offset_layer_pallas.1} parent=27 // pred_region
        %p156 = scmp.lt.s32.totalorder %s10, 1
        %s157 = scalar_select %p156, %s10, 1
        %s158 = smul.addr %s157, 2
        %s159 = smul.addr %s158, 4
        %s160 = scalar_lea.vmem %s3, %s159
      $region32: #{offset_layer_pallas.1} parent=27 // pred_fallthru
        _
    $region28: #{offset_layer_pallas.1} parent=5 // pred_fallthru
      _
    %p161 = scmp.le.s32.totalorder 1, %s10
    %p162 = scmp.lt.s32.totalorder %s10, 3
    %p163 = pnand %p161, %p162
    %p164 = pneg %p163
    // Predicated region
    $region33: #{offset_layer_pallas.1} parent=5 // pred_check
      _
    $region34: #{offset_layer_pallas.1} parent=5 // pred_check_branch
      %166 = sbr.rel (%p163) target = $region36
    $region35: #{offset_layer_pallas.1} parent=5 // pred_region
      %s167 = ssub.s32 %s10, 1
      %p168 = pneg %p31
      %p169 = pneg %p28
      %p170 = pneg %p52
      %p171 = pneg %p49
      %p172 = pneg %p73
      %p173 = pneg %p70
      %p174 = scmp.lt.s32.totalorder %s15, 1
      %s175 = scalar_select %p174, %s15, 1
      %s176 = smul.addr %s175, 2
      %s177 = smul.addr %s176, 4
      %s178 = scalar_lea.vmem %s3, %s177
      %p179 = pneg %p99
      %p180 = pneg %p96
      %p181 = pneg %p125
      %p182 = pneg %p122
      %p183 = scmp.lt.s32.totalorder %s15, 1
      %s184 = scalar_select %p183, %s15, 1
      %s185 = smul.addr %s184, 2
      %s186 = smul.addr %s185, 2
      %s187 = scalar_lea.vmem %s4, %s186
      %p188 = scmp.lt.s32.totalorder %s15, 1
      %s189 = scalar_select %p188, %s15, 1
      %s190 = smul.addr %s189, 2
      %s191 = smul.addr %s190, 4
      %s192 = scalar_lea.vmem %s3, %s191
      %p193 = scmp.lt.s32.totalorder %s15, 1
      %s194 = scalar_select %p193, %s15, 1
      %s195 = smul.addr %s194, 2
      %s196 = smul.addr %s195, 2
      %s197 = scalar_lea.vmem %s4, %s196
      %v198 = vld [vmem:[%s192] sm:$0xff]
      %v199 = vld [vmem:[%s2] sm:$0x3]
      %v200 = vlaneseq
      %v201 = vand.u32 %v200, 127
      %v202 = vadd.s32 %v201, 128
      %vm203 = vcmp.ge.s32.totalorder %v201, 16
      %vm204 = vcmp.ge.s32.totalorder %v202, 16
      %vm205 = vcmp.lt.s32.totalorder %v201, 240
      %vm206 = vcmp.lt.s32.totalorder %v202, 240
      %vm207 = vcmp.ne.s32.totalorder %v199, 0
      %vm208 = vcmp.ne.s32.totalorder %v199, 15
      %v210 = vcombine.high %v198, %v198
      %212 = vrot.lane.b32.xlu0 %v198, 17
      %v213 = vpop.permute.xlu0 %212
      %214 = vrot.lane.b32.xlu0 %v210, 17
      %v215 = vpop.permute.xlu0 %214
      %vm216 = vcmp.lt.s32.totalorder %v201, 17
      %v217 = vsel %vm216, %v213, %v215
      %v218 = vsel %vm216, %v215, %v213
      %v219 = vsel %vm207, 1, 0
      %v220 = vlaneseq
      %v221 = vshrl.u32 %v220, 7
      %v222 = vsub.s32 0, %v221
      %v223 = vrot.slane %v219, %v222
      %v224 = vlaneseq
      %v225 = vshrl.u32 %v224, 7
      %v226 = vsub.s32 1, %v225
      %v227 = vrot.slane %v219, %v226
      %vm228 = vcmp.ne.s32.totalorder %v223, 0
      %vm229 = vcmp.ne.s32.totalorder %v227, 0
      %vm230 = vmand %vm203, %vm228
      %vm231 = vmand %vm204, %vm229
      %v232 = vsel %vm230, 1, 0
      %v233 = vsel %vm231, 1, 0
      %v234 = vlaneseq
      %v235 = vshrl.u32 %v234, 7
      %v236 = vsub.s32 0, %v235
      %v237 = vrot.slane %v232, %v236
      %v238 = vlaneseq
      %v239 = vshrl.u32 %v238, 7
      %v240 = vsub.s32 0, %v239
      %v241 = vrot.slane %v233, %v240
      %vm242 = vcmp.eq.s32.totalorder %v237, 1
      %vm243 = vcmp.eq.s32.totalorder %v241, 1
      %v244 = vsel %vm242, %v218, 0.0
      %v245 = vsel %vm243, %v217, 0.0
      %v246 = vld [vmem:[%s0] sm:$0x3]
      %247 = vrot.lane.b32.xlu0 %v198, 16
      %v248 = vpop.permute.xlu0 %247
      %249 = vrot.lane.b32.xlu0 %v210, 16
      %v250 = vpop.permute.xlu0 %249
      %vm251 = vcmp.lt.s32.totalorder %v201, 16
      %v252 = vsel %vm251, %v248, %v250
      %v253 = vsel %vm251, %v250, %v248
      %v254 = vsel %vm203, 1, 0
      %v255 = vsel %vm204, 1, 0
      %vm256 = vcmp.eq.s32.totalorder %v254, 1
      %vm257 = vcmp.eq.s32.totalorder %v255, 1
      %v258 = vsel %vm256, %v253, 0.0
      %v259 = vsel %vm257, %v252, 0.0
      %s260 = scalar_lea.vmem %s0, 2
      %v261 = vld [vmem:[%s260] sm:$0x3]
      %vm262 = vcmask 31744
      %v264 = vsel %vm262, %v261, 0
      %vm266 = vcmask 1043456
      %v268 = vsel %vm266, %v258, 0
      %v271 = vsel %vm266, %v259, 0
      %273 = vmatprep.subr.mxu0 0.0
      %274 = vmatpush1.msra.mxu0 0.0
      %275 = vmatprep.subr.mxu0 0.0
      %276 = vmatpush1.msra.mxu0 0.0
      %277 = vmatprep.subr.mxu0 0.0
      %278 = vmatpush1.msra.mxu0 0.0
      %279 = vmatprep.subr.mxu0 0.0
      %280 = vmatpush1.msra.mxu0 0.0
      %281 = vmatprep.subr.mxu0 0.0
      %282 = vmatpush1.msra.mxu0 0.0
      %283 = vmatprep.subr.mxu0 0.0
      %284 = vmatpush1.msra.mxu0 0.0
      %285 = vmatprep.subr.mxu0 0.0
      %286 = vmatpush1.msra.mxu0 0.0
      %287 = vmatprep.subr.mxu0 0.0
      %288 = vmatpush1.msra.mxu0 0.0
      %289 = vmatprep.subr.mxu0 0.0
      %290 = vmatpush1.msra.mxu0 0.0
      %291 = vmatprep.subr.mxu0 0.0
      %292 = vmatpush1.msra.mxu0 0.0
      %293 = vmatprep.subr.mxu0 0.0
      %294 = vmatpush1.msra.mxu0 0.0
      %295 = vmatprep.subr.mxu0 0.0
      %296 = vmatpush1.msra.mxu0 0.0
      %297 = vmatprep.subr.mxu0 0.0
      %298 = vmatpush1.msra.mxu0 0.0
      %299 = vmatprep.subr.mxu0 0.0
      %300 = vmatpush1.msra.mxu0 0.0
      %301 = vmatprep.subr.mxu0 0.0
      %302 = vmatpush1.msra.mxu0 0.0
      %303 = vmatprep.subr.mxu0 %v271
      %304 = vmatpush1.msra.mxu0 %v268
      %305 = vmatprep.subr.mxu0 0.0
      %306 = vmatpush2.msra.mxu0 0.0
      %307 = vmatprep.subr.mxu0 0.0
      %308 = vmatpush2.msra.mxu0 0.0
      %309 = vmatprep.subr.mxu0 0.0
      %310 = vmatpush2.msra.mxu0 0.0
      %311 = vmatprep.subr.mxu0 0.0
      %312 = vmatpush2.msra.mxu0 0.0
      %313 = vmatprep.subr.mxu0 0.0
      %314 = vmatpush2.msra.mxu0 0.0
      %315 = vmatprep.subr.mxu0 0.0
      %316 = vmatpush2.msra.mxu0 0.0
      %317 = vmatprep.subr.mxu0 0.0
      %318 = vmatpush2.msra.mxu0 0.0
      %319 = vmatprep.subr.mxu0 0.0
      %320 = vmatpush2.msra.mxu0 0.0
      %321 = vmatprep.subr.mxu0 0.0
      %322 = vmatpush2.msra.mxu0 0.0
      %323 = vmatprep.subr.mxu0 0.0
      %324 = vmatpush2.msra.mxu0 0.0
      %325 = vmatprep.subr.mxu0 0.0
      %326 = vmatpush2.msra.mxu0 0.0
      %327 = vmatprep.subr.mxu0 0.0
      %328 = vmatpush2.msra.mxu0 0.0
      %329 = vmatprep.subr.mxu0 0.0
      %330 = vmatpush2.msra.mxu0 0.0
      %331 = vmatprep.subr.mxu0 0.0
      %332 = vmatpush2.msra.mxu0 0.0
      %333 = vmatprep.subr.mxu0 0.0
      %334 = vmatpush2.msra.mxu0 0.0
      %335 = vmatprep.subr.mxu0 0.0
      %336 = vmatpush2.msra.mxu0 0.0
      %337 = vmatprep.mubr.f32.mxu0 0.0
      %338 = vmatmul.mubr.f32.gmra.mxu0 %v264
      %v339 = vpop.f32.mrf.mxu0
      %v340 = vadd.f32 0.0, %v339
      %v341 = vpop.f32.mrf.mxu0
      %v342 = vadd.f32 0.0, %v341
      %343 = vdwg.mxu0
      %v345 = vsel %vm262, %v246, 0
      %v348 = vsel %vm266, %v244, 0
      %v351 = vsel %vm266, %v245, 0
      %353 = vmatprep.subr.mxu0 0.0
      %354 = vmatpush1.msra.mxu0 0.0
      %355 = vmatprep.subr.mxu0 0.0
      %356 = vmatpush1.msra.mxu0 0.0
      %357 = vmatprep.subr.mxu0 0.0
      %358 = vmatpush1.msra.mxu0 0.0
      %359 = vmatprep.subr.mxu0 0.0
      %360 = vmatpush1.msra.mxu0 0.0
      %361 = vmatprep.subr.mxu0 0.0
      %362 = vmatpush1.msra.mxu0 0.0
      %363 = vmatprep.subr.mxu0 0.0
      %364 = vmatpush1.msra.mxu0 0.0
      %365 = vmatprep.subr.mxu0 0.0
      %366 = vmatpush1.msra.mxu0 0.0
      %367 = vmatprep.subr.mxu0 0.0
      %368 = vmatpush1.msra.mxu0 0.0
      %369 = vmatprep.subr.mxu0 0.0
      %370 = vmatpush1.msra.mxu0 0.0
      %371 = vmatprep.subr.mxu0 0.0
      %372 = vmatpush1.msra.mxu0 0.0
      %373 = vmatprep.subr.mxu0 0.0
      %374 = vmatpush1.msra.mxu0 0.0
      %375 = vmatprep.subr.mxu0 0.0
      %376 = vmatpush1.msra.mxu0 0.0
      %377 = vmatprep.subr.mxu0 0.0
      %378 = vmatpush1.msra.mxu0 0.0
      %379 = vmatprep.subr.mxu0 0.0
      %380 = vmatpush1.msra.mxu0 0.0
      %381 = vmatprep.subr.mxu0 0.0
      %382 = vmatpush1.msra.mxu0 0.0
      %383 = vmatprep.subr.mxu0 %v351
      %384 = vmatpush1.msra.mxu0 %v348
      %385 = vmatprep.subr.mxu0 0.0
      %386 = vmatpush2.msra.mxu0 0.0
      %387 = vmatprep.subr.mxu0 0.0
      %388 = vmatpush2.msra.mxu0 0.0
      %389 = vmatprep.subr.mxu0 0.0
      %390 = vmatpush2.msra.mxu0 0.0
      %391 = vmatprep.subr.mxu0 0.0
      %392 = vmatpush2.msra.mxu0 0.0
      %393 = vmatprep.subr.mxu0 0.0
      %394 = vmatpush2.msra.mxu0 0.0
      %395 = vmatprep.subr.mxu0 0.0
      %396 = vmatpush2.msra.mxu0 0.0
      %397 = vmatprep.subr.mxu0 0.0
      %398 = vmatpush2.msra.mxu0 0.0
      %399 = vmatprep.subr.mxu0 0.0
      %400 = vmatpush2.msra.mxu0 0.0
      %401 = vmatprep.subr.mxu0 0.0
      %402 = vmatpush2.msra.mxu0 0.0
      %403 = vmatprep.subr.mxu0 0.0
      %404 = vmatpush2.msra.mxu0 0.0
      %405 = vmatprep.subr.mxu0 0.0
      %406 = vmatpush2.msra.mxu0 0.0
      %407 = vmatprep.subr.mxu0 0.0
      %408 = vmatpush2.msra.mxu0 0.0
      %409 = vmatprep.subr.mxu0 0.0
      %410 = vmatpush2.msra.mxu0 0.0
      %411 = vmatprep.subr.mxu0 0.0
      %412 = vmatpush2.msra.mxu0 0.0
      %413 = vmatprep.subr.mxu0 0.0
      %414 = vmatpush2.msra.mxu0 0.0
      %415 = vmatprep.subr.mxu0 0.0
      %416 = vmatpush2.msra.mxu0 0.0
      %417 = vmatprep.mubr.f32.mxu0 0.0
      %418 = vmatmul.mubr.f32.gmra.mxu0 %v345
      %v419 = vpop.f32.mrf.mxu0
      %v420 = vadd.f32 %v340, %v419
      %v421 = vpop.f32.mrf.mxu0
      %v422 = vadd.f32 %v342, %v421
      %423 = vdwg.mxu0
      %424 = vrot.lane.b32.xlu0 %v198, 15
      %v425 = vpop.permute.xlu0 %424
      %426 = vrot.lane.b32.xlu0 %v210, 15
      %v427 = vpop.permute.xlu0 %426
      %vm428 = vcmp.lt.s32.totalorder %v201, 15
      %v429 = vsel %vm428, %v425, %v427
      %v430 = vsel %vm428, %v427, %v425
      %v431 = vsel %vm208, 1, 0
      %v432 = vlaneseq
      %v433 = vshrl.u32 %v432, 7
      %v434 = vsub.s32 0, %v433
      %v435 = vrot.slane %v431, %v434
      %v436 = vlaneseq
      %v437 = vshrl.u32 %v436, 7
      %v438 = vsub.s32 1, %v437
      %v439 = vrot.slane %v431, %v438
      %vm440 = vcmp.ne.s32.totalorder %v435, 0
      %vm441 = vcmp.ne.s32.totalorder %v439, 0
      %vm442 = vmand %vm203, %vm440
      %vm443 = vmand %vm204, %vm441
      %v444 = vsel %vm442, 1, 0
      %v445 = vsel %vm443, 1, 0
      %v446 = vlaneseq
      %v447 = vshrl.u32 %v446, 7
      %v448 = vsub.s32 0, %v447
      %v449 = vrot.slane %v444, %v448
      %v450 = vlaneseq
      %v451 = vshrl.u32 %v450, 7
      %v452 = vsub.s32 0, %v451
      %v453 = vrot.slane %v445, %v452
      %vm454 = vcmp.eq.s32.totalorder %v449, 1
      %vm455 = vcmp.eq.s32.totalorder %v453, 1
      %v456 = vsel %vm454, %v430, 0.0
      %v457 = vsel %vm455, %v429, 0.0
      %s458 = scalar_lea.vmem %s0, 4
      %v459 = vld [vmem:[%s458] sm:$0x3]
      %v461 = vsel %vm262, %v459, 0
      %v464 = vsel %vm266, %v456, 0
      %v467 = vsel %vm266, %v457, 0
      %469 = vmatprep.subr.mxu0 0.0
      %470 = vmatpush1.msra.mxu0 0.0
      %471 = vmatprep.subr.mxu0 0.0
      %472 = vmatpush1.msra.mxu0 0.0
      %473 = vmatprep.subr.mxu0 0.0
      %474 = vmatpush1.msra.mxu0 0.0
      %475 = vmatprep.subr.mxu0 0.0
      %476 = vmatpush1.msra.mxu0 0.0
      %477 = vmatprep.subr.mxu0 0.0
      %478 = vmatpush1.msra.mxu0 0.0
      %479 = vmatprep.subr.mxu0 0.0
      %480 = vmatpush1.msra.mxu0 0.0
      %481 = vmatprep.subr.mxu0 0.0
      %482 = vmatpush1.msra.mxu0 0.0
      %483 = vmatprep.subr.mxu0 0.0
      %484 = vmatpush1.msra.mxu0 0.0
      %485 = vmatprep.subr.mxu0 0.0
      %486 = vmatpush1.msra.mxu0 0.0
      %487 = vmatprep.subr.mxu0 0.0
      %488 = vmatpush1.msra.mxu0 0.0
      %489 = vmatprep.subr.mxu0 0.0
      %490 = vmatpush1.msra.mxu0 0.0
      %491 = vmatprep.subr.mxu0 0.0
      %492 = vmatpush1.msra.mxu0 0.0
      %493 = vmatprep.subr.mxu0 0.0
      %494 = vmatpush1.msra.mxu0 0.0
      %495 = vmatprep.subr.mxu0 0.0
      %496 = vmatpush1.msra.mxu0 0.0
      %497 = vmatprep.subr.mxu0 0.0
      %498 = vmatpush1.msra.mxu0 0.0
      %499 = vmatprep.subr.mxu0 %v467
      %500 = vmatpush1.msra.mxu0 %v464
      %501 = vmatprep.subr.mxu0 0.0
      %502 = vmatpush2.msra.mxu0 0.0
      %503 = vmatprep.subr.mxu0 0.0
      %504 = vmatpush2.msra.mxu0 0.0
      %505 = vmatprep.subr.mxu0 0.0
      %506 = vmatpush2.msra.mxu0 0.0
      %507 = vmatprep.subr.mxu0 0.0
      %508 = vmatpush2.msra.mxu0 0.0
      %509 = vmatprep.subr.mxu0 0.0
      %510 = vmatpush2.msra.mxu0 0.0
      %511 = vmatprep.subr.mxu0 0.0
      %512 = vmatpush2.msra.mxu0 0.0
      %513 = vmatprep.subr.mxu0 0.0
      %514 = vmatpush2.msra.mxu0 0.0
      %515 = vmatprep.subr.mxu0 0.0
      %516 = vmatpush2.msra.mxu0 0.0
      %517 = vmatprep.subr.mxu0 0.0
      %518 = vmatpush2.msra.mxu0 0.0
      %519 = vmatprep.subr.mxu0 0.0
      %520 = vmatpush2.msra.mxu0 0.0
      %521 = vmatprep.subr.mxu0 0.0
      %522 = vmatpush2.msra.mxu0 0.0
      %523 = vmatprep.subr.mxu0 0.0
      %524 = vmatpush2.msra.mxu0 0.0
      %525 = vmatprep.subr.mxu0 0.0
      %526 = vmatpush2.msra.mxu0 0.0
      %527 = vmatprep.subr.mxu0 0.0
      %528 = vmatpush2.msra.mxu0 0.0
      %529 = vmatprep.subr.mxu0 0.0
      %530 = vmatpush2.msra.mxu0 0.0
      %531 = vmatprep.subr.mxu0 0.0
      %532 = vmatpush2.msra.mxu0 0.0
      %533 = vmatprep.mubr.f32.mxu0 0.0
      %534 = vmatmul.mubr.f32.gmra.mxu0 %v461
      %v535 = vpop.f32.mrf.mxu0
      %v536 = vadd.f32 0.0, %v535
      %v537 = vpop.f32.mrf.mxu0
      %v538 = vadd.f32 0.0, %v537
      %539 = vdwg.mxu0
      %v540 = vadd.f32 %v420, %v536
      %v541 = vadd.f32 %v422, %v538
      %542 = vrot.lane.b32.xlu0 %v198, 1
      %v543 = vpop.permute.xlu0 %542
      %544 = vrot.lane.b32.xlu0 %v210, 1
      %v545 = vpop.permute.xlu0 %544
      %vm546 = vcmp.lt.s32.totalorder %v201, 1
      %v547 = vsel %vm546, %v543, %v545
      %v548 = vsel %vm546, %v545, %v543
      %vm549 = vcmp.eq.s32.totalorder %v223, 1
      %vm550 = vcmp.eq.s32.totalorder %v227, 1
      %v551 = vsel %vm549, %v548, 0.0
      %v552 = vsel %vm550, %v547, 0.0
      %s553 = scalar_lea.vmem %s0, 6
      %v554 = vld [vmem:[%s553] sm:$0x3]
      %v556 = vsel %vm262, %v554, 0
      %v559 = vsel %vm266, %v551, 0
      %v562 = vsel %vm266, %v552, 0
      %564 = vmatprep.subr.mxu0 0.0
      %565 = vmatpush1.msra.mxu0 0.0
      %566 = vmatprep.subr.mxu0 0.0
      %567 = vmatpush1.msra.mxu0 0.0
      %568 = vmatprep.subr.mxu0 0.0
      %569 = vmatpush1.msra.mxu0 0.0
      %570 = vmatprep.subr.mxu0 0.0
      %571 = vmatpush1.msra.mxu0 0.0
      %572 = vmatprep.subr.mxu0 0.0
      %573 = vmatpush1.msra.mxu0 0.0
      %574 = vmatprep.subr.mxu0 0.0
      %575 = vmatpush1.msra.mxu0 0.0
      %576 = vmatprep.subr.mxu0 0.0
      %577 = vmatpush1.msra.mxu0 0.0
      %578 = vmatprep.subr.mxu0 0.0
      %579 = vmatpush1.msra.mxu0 0.0
      %580 = vmatprep.subr.mxu0 0.0
      %581 = vmatpush1.msra.mxu0 0.0
      %582 = vmatprep.subr.mxu0 0.0
      %583 = vmatpush1.msra.mxu0 0.0
      %584 = vmatprep.subr.mxu0 0.0
      %585 = vmatpush1.msra.mxu0 0.0
      %586 = vmatprep.subr.mxu0 0.0
      %587 = vmatpush1.msra.mxu0 0.0
      %588 = vmatprep.subr.mxu0 0.0
      %589 = vmatpush1.msra.mxu0 0.0
      %590 = vmatprep.subr.mxu0 0.0
      %591 = vmatpush1.msra.mxu0 0.0
      %592 = vmatprep.subr.mxu0 0.0
      %593 = vmatpush1.msra.mxu0 0.0
      %594 = vmatprep.subr.mxu0 %v562
      %595 = vmatpush1.msra.mxu0 %v559
      %596 = vmatprep.subr.mxu0 0.0
      %597 = vmatpush2.msra.mxu0 0.0
      %598 = vmatprep.subr.mxu0 0.0
      %599 = vmatpush2.msra.mxu0 0.0
      %600 = vmatprep.subr.mxu0 0.0
      %601 = vmatpush2.msra.mxu0 0.0
      %602 = vmatprep.subr.mxu0 0.0
      %603 = vmatpush2.msra.mxu0 0.0
      %604 = vmatprep.subr.mxu0 0.0
      %605 = vmatpush2.msra.mxu0 0.0
      %606 = vmatprep.subr.mxu0 0.0
      %607 = vmatpush2.msra.mxu0 0.0
      %608 = vmatprep.subr.mxu0 0.0
      %609 = vmatpush2.msra.mxu0 0.0
      %610 = vmatprep.subr.mxu0 0.0
      %611 = vmatpush2.msra.mxu0 0.0
      %612 = vmatprep.subr.mxu0 0.0
      %613 = vmatpush2.msra.mxu0 0.0
      %614 = vmatprep.subr.mxu0 0.0
      %615 = vmatpush2.msra.mxu0 0.0
      %616 = vmatprep.subr.mxu0 0.0
      %617 = vmatpush2.msra.mxu0 0.0
      %618 = vmatprep.subr.mxu0 0.0
      %619 = vmatpush2.msra.mxu0 0.0
      %620 = vmatprep.subr.mxu0 0.0
      %621 = vmatpush2.msra.mxu0 0.0
      %622 = vmatprep.subr.mxu0 0.0
      %623 = vmatpush2.msra.mxu0 0.0
      %624 = vmatprep.subr.mxu0 0.0
      %625 = vmatpush2.msra.mxu0 0.0
      %626 = vmatprep.subr.mxu0 0.0
      %627 = vmatpush2.msra.mxu0 0.0
      %628 = vmatprep.mubr.f32.mxu0 0.0
      %629 = vmatmul.mubr.f32.gmra.mxu0 %v556
      %v630 = vpop.f32.mrf.mxu0
      %v631 = vadd.f32 0.0, %v630
      %v632 = vpop.f32.mrf.mxu0
      %v633 = vadd.f32 0.0, %v632
      %634 = vdwg.mxu0
      %v635 = vadd.f32 %v540, %v631
      %v636 = vadd.f32 %v541, %v633
      %s637 = scalar_lea.vmem %s0, 8
      %v638 = vld [vmem:[%s637] sm:$0x3]
      %v640 = vsel %vm262, %v638, 0
      %v642 = vsel %vm266, %v198, 0
      %v644 = vsel %vm266, %v210, 0
      %646 = vmatprep.subr.mxu0 0.0
      %647 = vmatpush1.msra.mxu0 0.0
      %648 = vmatprep.subr.mxu0 0.0
      %649 = vmatpush1.msra.mxu0 0.0
      %650 = vmatprep.subr.mxu0 0.0
      %651 = vmatpush1.msra.mxu0 0.0
      %652 = vmatprep.subr.mxu0 0.0
      %653 = vmatpush1.msra.mxu0 0.0
      %654 = vmatprep.subr.mxu0 0.0
      %655 = vmatpush1.msra.mxu0 0.0
      %656 = vmatprep.subr.mxu0 0.0
      %657 = vmatpush1.msra.mxu0 0.0
      %658 = vmatprep.subr.mxu0 0.0
      %659 = vmatpush1.msra.mxu0 0.0
      %660 = vmatprep.subr.mxu0 0.0
      %661 = vmatpush1.msra.mxu0 0.0
      %662 = vmatprep.subr.mxu0 0.0
      %663 = vmatpush1.msra.mxu0 0.0
      %664 = vmatprep.subr.mxu0 0.0
      %665 = vmatpush1.msra.mxu0 0.0
      %666 = vmatprep.subr.mxu0 0.0
      %667 = vmatpush1.msra.mxu0 0.0
      %668 = vmatprep.subr.mxu0 0.0
      %669 = vmatpush1.msra.mxu0 0.0
      %670 = vmatprep.subr.mxu0 0.0
      %671 = vmatpush1.msra.mxu0 0.0
      %672 = vmatprep.subr.mxu0 0.0
      %673 = vmatpush1.msra.mxu0 0.0
      %674 = vmatprep.subr.mxu0 0.0
      %675 = vmatpush1.msra.mxu0 0.0
      %676 = vmatprep.subr.mxu0 %v644
      %677 = vmatpush1.msra.mxu0 %v642
      %678 = vmatprep.subr.mxu0 0.0
      %679 = vmatpush2.msra.mxu0 0.0
      %680 = vmatprep.subr.mxu0 0.0
      %681 = vmatpush2.msra.mxu0 0.0
      %682 = vmatprep.subr.mxu0 0.0
      %683 = vmatpush2.msra.mxu0 0.0
      %684 = vmatprep.subr.mxu0 0.0
      %685 = vmatpush2.msra.mxu0 0.0
      %686 = vmatprep.subr.mxu0 0.0
      %687 = vmatpush2.msra.mxu0 0.0
      %688 = vmatprep.subr.mxu0 0.0
      %689 = vmatpush2.msra.mxu0 0.0
      %690 = vmatprep.subr.mxu0 0.0
      %691 = vmatpush2.msra.mxu0 0.0
      %692 = vmatprep.subr.mxu0 0.0
      %693 = vmatpush2.msra.mxu0 0.0
      %694 = vmatprep.subr.mxu0 0.0
      %695 = vmatpush2.msra.mxu0 0.0
      %696 = vmatprep.subr.mxu0 0.0
      %697 = vmatpush2.msra.mxu0 0.0
      %698 = vmatprep.subr.mxu0 0.0
      %699 = vmatpush2.msra.mxu0 0.0
      %700 = vmatprep.subr.mxu0 0.0
      %701 = vmatpush2.msra.mxu0 0.0
      %702 = vmatprep.subr.mxu0 0.0
      %703 = vmatpush2.msra.mxu0 0.0
      %704 = vmatprep.subr.mxu0 0.0
      %705 = vmatpush2.msra.mxu0 0.0
      %706 = vmatprep.subr.mxu0 0.0
      %707 = vmatpush2.msra.mxu0 0.0
      %708 = vmatprep.subr.mxu0 0.0
      %709 = vmatpush2.msra.mxu0 0.0
      %710 = vmatprep.mubr.f32.mxu0 0.0
      %711 = vmatmul.mubr.f32.gmra.mxu0 %v640
      %v712 = vpop.f32.mrf.mxu0
      %v713 = vadd.f32 0.0, %v712
      %v714 = vpop.f32.mrf.mxu0
      %v715 = vadd.f32 0.0, %v714
      %716 = vdwg.mxu0
      %v717 = vadd.f32 %v635, %v713
      %v718 = vadd.f32 %v636, %v715
      %719 = vrot.lane.b32.xlu0 %v198, 127
      %v720 = vpop.permute.xlu0 %719
      %721 = vrot.lane.b32.xlu0 %v210, 127
      %v722 = vpop.permute.xlu0 %721
      %vm723 = vcmp.lt.s32.totalorder %v201, 127
      %v724 = vsel %vm723, %v720, %v722
      %v725 = vsel %vm723, %v722, %v720
      %vm726 = vcmp.eq.s32.totalorder %v435, 1
      %vm727 = vcmp.eq.s32.totalorder %v439, 1
      %v728 = vsel %vm726, %v724, 0.0
      %v729 = vsel %vm727, %v725, 0.0
      %s730 = scalar_lea.vmem %s0, 10
      %v731 = vld [vmem:[%s730] sm:$0x3]
      %v733 = vsel %vm262, %v731, 0
      %v736 = vsel %vm266, %v728, 0
      %v739 = vsel %vm266, %v729, 0
      %741 = vmatprep.subr.mxu0 0.0
      %742 = vmatpush1.msra.mxu0 0.0
      %743 = vmatprep.subr.mxu0 0.0
      %744 = vmatpush1.msra.mxu0 0.0
      %745 = vmatprep.subr.mxu0 0.0
      %746 = vmatpush1.msra.mxu0 0.0
      %747 = vmatprep.subr.mxu0 0.0
      %748 = vmatpush1.msra.mxu0 0.0
      %749 = vmatprep.subr.mxu0 0.0
      %750 = vmatpush1.msra.mxu0 0.0
      %751 = vmatprep.subr.mxu0 0.0
      %752 = vmatpush1.msra.mxu0 0.0
      %753 = vmatprep.subr.mxu0 0.0
      %754 = vmatpush1.msra.mxu0 0.0
      %755 = vmatprep.subr.mxu0 0.0
      %756 = vmatpush1.msra.mxu0 0.0
      %757 = vmatprep.subr.mxu0 0.0
      %758 = vmatpush1.msra.mxu0 0.0
      %759 = vmatprep.subr.mxu0 0.0
      %760 = vmatpush1.msra.mxu0 0.0
      %761 = vmatprep.subr.mxu0 0.0
      %762 = vmatpush1.msra.mxu0 0.0
      %763 = vmatprep.subr.mxu0 0.0
      %764 = vmatpush1.msra.mxu0 0.0
      %765 = vmatprep.subr.mxu0 0.0
      %766 = vmatpush1.msra.mxu0 0.0
      %767 = vmatprep.subr.mxu0 0.0
      %768 = vmatpush1.msra.mxu0 0.0
      %769 = vmatprep.subr.mxu0 0.0
      %770 = vmatpush1.msra.mxu0 0.0
      %771 = vmatprep.subr.mxu0 %v739
      %772 = vmatpush1.msra.mxu0 %v736
      %773 = vmatprep.subr.mxu0 0.0
      %774 = vmatpush2.msra.mxu0 0.0
      %775 = vmatprep.subr.mxu0 0.0
      %776 = vmatpush2.msra.mxu0 0.0
      %777 = vmatprep.subr.mxu0 0.0
      %778 = vmatpush2.msra.mxu0 0.0
      %779 = vmatprep.subr.mxu0 0.0
      %780 = vmatpush2.msra.mxu0 0.0
      %781 = vmatprep.subr.mxu0 0.0
      %782 = vmatpush2.msra.mxu0 0.0
      %783 = vmatprep.subr.mxu0 0.0
      %784 = vmatpush2.msra.mxu0 0.0
      %785 = vmatprep.subr.mxu0 0.0
      %786 = vmatpush2.msra.mxu0 0.0
      %787 = vmatprep.subr.mxu0 0.0
      %788 = vmatpush2.msra.mxu0 0.0
      %789 = vmatprep.subr.mxu0 0.0
      %790 = vmatpush2.msra.mxu0 0.0
      %791 = vmatprep.subr.mxu0 0.0
      %792 = vmatpush2.msra.mxu0 0.0
      %793 = vmatprep.subr.mxu0 0.0
      %794 = vmatpush2.msra.mxu0 0.0
      %795 = vmatprep.subr.mxu0 0.0
      %796 = vmatpush2.msra.mxu0 0.0
      %797 = vmatprep.subr.mxu0 0.0
      %798 = vmatpush2.msra.mxu0 0.0
      %799 = vmatprep.subr.mxu0 0.0
      %800 = vmatpush2.msra.mxu0 0.0
      %801 = vmatprep.subr.mxu0 0.0
      %802 = vmatpush2.msra.mxu0 0.0
      %803 = vmatprep.subr.mxu0 0.0
      %804 = vmatpush2.msra.mxu0 0.0
      %805 = vmatprep.mubr.f32.mxu0 0.0
      %806 = vmatmul.mubr.f32.gmra.mxu0 %v733
      %v807 = vpop.f32.mrf.mxu0
      %v808 = vadd.f32 0.0, %v807
      %v809 = vpop.f32.mrf.mxu0
      %v810 = vadd.f32 0.0, %v809
      %811 = vdwg.mxu0
      %v812 = vadd.f32 %v717, %v808
      %v813 = vadd.f32 %v718, %v810
      %814 = vrot.lane.b32.xlu0 %v198, 113
      %v815 = vpop.permute.xlu0 %814
      %816 = vrot.lane.b32.xlu0 %v210, 113
      %v817 = vpop.permute.xlu0 %816
      %vm818 = vcmp.lt.s32.totalorder %v201, 113
      %v819 = vsel %vm818, %v815, %v817
      %v820 = vsel %vm818, %v817, %v815
      %vm821 = vmand %vm205, %vm228
      %vm822 = vmand %vm206, %vm229
      %v823 = vsel %vm821, 1, 0
      %v824 = vsel %vm822, 1, 0
      %v825 = vlaneseq
      %v826 = vshrl.u32 %v825, 7
      %v827 = vsub.s32 0, %v826
      %v828 = vrot.slane %v823, %v827
      %v829 = vlaneseq
      %v830 = vshrl.u32 %v829, 7
      %v831 = vsub.s32 0, %v830
      %v832 = vrot.slane %v824, %v831
      %vm833 = vcmp.eq.s32.totalorder %v828, 1
      %vm834 = vcmp.eq.s32.totalorder %v832, 1
      %v835 = vsel %vm833, %v819, 0.0
      %v836 = vsel %vm834, %v820, 0.0
      %s837 = scalar_lea.vmem %s0, 12
      %v838 = vld [vmem:[%s837] sm:$0x3]
      %v840 = vsel %vm262, %v838, 0
      %v843 = vsel %vm266, %v835, 0
      %v846 = vsel %vm266, %v836, 0
      %848 = vmatprep.subr.mxu0 0.0
      %849 = vmatpush1.msra.mxu0 0.0
      %850 = vmatprep.subr.mxu0 0.0
      %851 = vmatpush1.msra.mxu0 0.0
      %852 = vmatprep.subr.mxu0 0.0
      %853 = vmatpush1.msra.mxu0 0.0
      %854 = vmatprep.subr.mxu0 0.0
      %855 = vmatpush1.msra.mxu0 0.0
      %856 = vmatprep.subr.mxu0 0.0
      %857 = vmatpush1.msra.mxu0 0.0
      %858 = vmatprep.subr.mxu0 0.0
      %859 = vmatpush1.msra.mxu0 0.0
      %860 = vmatprep.subr.mxu0 0.0
      %861 = vmatpush1.msra.mxu0 0.0
      %862 = vmatprep.subr.mxu0 0.0
      %863 = vmatpush1.msra.mxu0 0.0
      %864 = vmatprep.subr.mxu0 0.0
      %865 = vmatpush1.msra.mxu0 0.0
      %866 = vmatprep.subr.mxu0 0.0
      %867 = vmatpush1.msra.mxu0 0.0
      %868 = vmatprep.subr.mxu0 0.0
      %869 = vmatpush1.msra.mxu0 0.0
      %870 = vmatprep.subr.mxu0 0.0
      %871 = vmatpush1.msra.mxu0 0.0
      %872 = vmatprep.subr.mxu0 0.0
      %873 = vmatpush1.msra.mxu0 0.0
      %874 = vmatprep.subr.mxu0 0.0
      %875 = vmatpush1.msra.mxu0 0.0
      %876 = vmatprep.subr.mxu0 0.0
      %877 = vmatpush1.msra.mxu0 0.0
      %878 = vmatprep.subr.mxu0 %v846
      %879 = vmatpush1.msra.mxu0 %v843
      %880 = vmatprep.subr.mxu0 0.0
      %881 = vmatpush2.msra.mxu0 0.0
      %882 = vmatprep.subr.mxu0 0.0
      %883 = vmatpush2.msra.mxu0 0.0
      %884 = vmatprep.subr.mxu0 0.0
      %885 = vmatpush2.msra.mxu0 0.0
      %886 = vmatprep.subr.mxu0 0.0
      %887 = vmatpush2.msra.mxu0 0.0
      %888 = vmatprep.subr.mxu0 0.0
      %889 = vmatpush2.msra.mxu0 0.0
      %890 = vmatprep.subr.mxu0 0.0
      %891 = vmatpush2.msra.mxu0 0.0
      %892 = vmatprep.subr.mxu0 0.0
      %893 = vmatpush2.msra.mxu0 0.0
      %894 = vmatprep.subr.mxu0 0.0
      %895 = vmatpush2.msra.mxu0 0.0
      %896 = vmatprep.subr.mxu0 0.0
      %897 = vmatpush2.msra.mxu0 0.0
      %898 = vmatprep.subr.mxu0 0.0
      %899 = vmatpush2.msra.mxu0 0.0
      %900 = vmatprep.subr.mxu0 0.0
      %901 = vmatpush2.msra.mxu0 0.0
      %902 = vmatprep.subr.mxu0 0.0
      %903 = vmatpush2.msra.mxu0 0.0
      %904 = vmatprep.subr.mxu0 0.0
      %905 = vmatpush2.msra.mxu0 0.0
      %906 = vmatprep.subr.mxu0 0.0
      %907 = vmatpush2.msra.mxu0 0.0
      %908 = vmatprep.subr.mxu0 0.0
      %909 = vmatpush2.msra.mxu0 0.0
      %910 = vmatprep.subr.mxu0 0.0
      %911 = vmatpush2.msra.mxu0 0.0
      %912 = vmatprep.mubr.f32.mxu0 0.0
      %913 = vmatmul.mubr.f32.gmra.mxu0 %v840
      %v914 = vpop.f32.mrf.mxu0
      %v915 = vadd.f32 0.0, %v914
      %v916 = vpop.f32.mrf.mxu0
      %v917 = vadd.f32 0.0, %v916
      %918 = vdwg.mxu0
      %v919 = vadd.f32 %v812, %v915
      %v920 = vadd.f32 %v813, %v917
      %921 = vrot.lane.b32.xlu0 %v198, 112
      %v922 = vpop.permute.xlu0 %921
      %923 = vrot.lane.b32.xlu0 %v210, 112
      %v924 = vpop.permute.xlu0 %923
      %vm925 = vcmp.lt.s32.totalorder %v201, 112
      %v926 = vsel %vm925, %v922, %v924
      %v927 = vsel %vm925, %v924, %v922
      %v928 = vsel %vm205, 1, 0
      %v929 = vsel %vm206, 1, 0
      %vm930 = vcmp.eq.s32.totalorder %v928, 1
      %vm931 = vcmp.eq.s32.totalorder %v929, 1
      %v932 = vsel %vm930, %v926, 0.0
      %v933 = vsel %vm931, %v927, 0.0
      %s934 = scalar_lea.vmem %s0, 14
      %v935 = vld [vmem:[%s934] sm:$0x3]
      %v937 = vsel %vm262, %v935, 0
      %v940 = vsel %vm266, %v932, 0
      %v943 = vsel %vm266, %v933, 0
      %945 = vmatprep.subr.mxu0 0.0
      %946 = vmatpush1.msra.mxu0 0.0
      %947 = vmatprep.subr.mxu0 0.0
      %948 = vmatpush1.msra.mxu0 0.0
      %949 = vmatprep.subr.mxu0 0.0
      %950 = vmatpush1.msra.mxu0 0.0
      %951 = vmatprep.subr.mxu0 0.0
      %952 = vmatpush1.msra.mxu0 0.0
      %953 = vmatprep.subr.mxu0 0.0
      %954 = vmatpush1.msra.mxu0 0.0
      %955 = vmatprep.subr.mxu0 0.0
      %956 = vmatpush1.msra.mxu0 0.0
      %957 = vmatprep.subr.mxu0 0.0
      %958 = vmatpush1.msra.mxu0 0.0
      %959 = vmatprep.subr.mxu0 0.0
      %960 = vmatpush1.msra.mxu0 0.0
      %961 = vmatprep.subr.mxu0 0.0
      %962 = vmatpush1.msra.mxu0 0.0
      %963 = vmatprep.subr.mxu0 0.0
      %964 = vmatpush1.msra.mxu0 0.0
      %965 = vmatprep.subr.mxu0 0.0
      %966 = vmatpush1.msra.mxu0 0.0
      %967 = vmatprep.subr.mxu0 0.0
      %968 = vmatpush1.msra.mxu0 0.0
      %969 = vmatprep.subr.mxu0 0.0
      %970 = vmatpush1.msra.mxu0 0.0
      %971 = vmatprep.subr.mxu0 0.0
      %972 = vmatpush1.msra.mxu0 0.0
      %973 = vmatprep.subr.mxu0 0.0
      %974 = vmatpush1.msra.mxu0 0.0
      %975 = vmatprep.subr.mxu0 %v943
      %976 = vmatpush1.msra.mxu0 %v940
      %977 = vmatprep.subr.mxu0 0.0
      %978 = vmatpush2.msra.mxu0 0.0
      %979 = vmatprep.subr.mxu0 0.0
      %980 = vmatpush2.msra.mxu0 0.0
      %981 = vmatprep.subr.mxu0 0.0
      %982 = vmatpush2.msra.mxu0 0.0
      %983 = vmatprep.subr.mxu0 0.0
      %984 = vmatpush2.msra.mxu0 0.0
      %985 = vmatprep.subr.mxu0 0.0
      %986 = vmatpush2.msra.mxu0 0.0
      %987 = vmatprep.subr.mxu0 0.0
      %988 = vmatpush2.msra.mxu0 0.0
      %989 = vmatprep.subr.mxu0 0.0
      %990 = vmatpush2.msra.mxu0 0.0
      %991 = vmatprep.subr.mxu0 0.0
      %992 = vmatpush2.msra.mxu0 0.0
      %993 = vmatprep.subr.mxu0 0.0
      %994 = vmatpush2.msra.mxu0 0.0
      %995 = vmatprep.subr.mxu0 0.0
      %996 = vmatpush2.msra.mxu0 0.0
      %997 = vmatprep.subr.mxu0 0.0
      %998 = vmatpush2.msra.mxu0 0.0
      %999 = vmatprep.subr.mxu0 0.0
      %1000 = vmatpush2.msra.mxu0 0.0
      %1001 = vmatprep.subr.mxu0 0.0
      %1002 = vmatpush2.msra.mxu0 0.0
      %1003 = vmatprep.subr.mxu0 0.0
      %1004 = vmatpush2.msra.mxu0 0.0
      %1005 = vmatprep.subr.mxu0 0.0
      %1006 = vmatpush2.msra.mxu0 0.0
      %1007 = vmatprep.subr.mxu0 0.0
      %1008 = vmatpush2.msra.mxu0 0.0
      %1009 = vmatprep.mubr.f32.mxu0 0.0
      %1010 = vmatmul.mubr.f32.gmra.mxu0 %v937
      %v1011 = vpop.f32.mrf.mxu0
      %v1012 = vadd.f32 0.0, %v1011
      %v1013 = vpop.f32.mrf.mxu0
      %v1014 = vadd.f32 0.0, %v1013
      %1015 = vdwg.mxu0
      %v1016 = vadd.f32 %v919, %v1012
      %v1017 = vadd.f32 %v920, %v1014
      %1018 = vrot.lane.b32.xlu0 %v198, 111
      %v1019 = vpop.permute.xlu0 %1018
      %1020 = vrot.lane.b32.xlu0 %v210, 111
      %v1021 = vpop.permute.xlu0 %1020
      %vm1022 = vcmp.lt.s32.totalorder %v201, 111
      %v1023 = vsel %vm1022, %v1019, %v1021
      %v1024 = vsel %vm1022, %v1021, %v1019
      %vm1025 = vmand %vm205, %vm440
      %vm1026 = vmand %vm206, %vm441
      %v1027 = vsel %vm1025, 1, 0
      %v1028 = vsel %vm1026, 1, 0
      %v1029 = vlaneseq
      %v1030 = vshrl.u32 %v1029, 7
      %v1031 = vsub.s32 0, %v1030
      %v1032 = vrot.slane %v1027, %v1031
      %v1033 = vlaneseq
      %v1034 = vshrl.u32 %v1033, 7
      %v1035 = vsub.s32 0, %v1034
      %v1036 = vrot.slane %v1028, %v1035
      %vm1037 = vcmp.eq.s32.totalorder %v1032, 1
      %vm1038 = vcmp.eq.s32.totalorder %v1036, 1
      %v1039 = vsel %vm1037, %v1023, 0.0
      %v1040 = vsel %vm1038, %v1024, 0.0
      %s1041 = scalar_lea.vmem %s0, 16
      %v1042 = vld [vmem:[%s1041] sm:$0x3]
      %v1044 = vsel %vm262, %v1042, 0
      %v1047 = vsel %vm266, %v1039, 0
      %v1050 = vsel %vm266, %v1040, 0
      %1052 = vmatprep.subr.mxu0 0.0
      %1053 = vmatpush1.msra.mxu0 0.0
      %1054 = vmatprep.subr.mxu0 0.0
      %1055 = vmatpush1.msra.mxu0 0.0
      %1056 = vmatprep.subr.mxu0 0.0
      %1057 = vmatpush1.msra.mxu0 0.0
      %1058 = vmatprep.subr.mxu0 0.0
      %1059 = vmatpush1.msra.mxu0 0.0
      %1060 = vmatprep.subr.mxu0 0.0
      %1061 = vmatpush1.msra.mxu0 0.0
      %1062 = vmatprep.subr.mxu0 0.0
      %1063 = vmatpush1.msra.mxu0 0.0
      %1064 = vmatprep.subr.mxu0 0.0
      %1065 = vmatpush1.msra.mxu0 0.0
      %1066 = vmatprep.subr.mxu0 0.0
      %1067 = vmatpush1.msra.mxu0 0.0
      %1068 = vmatprep.subr.mxu0 0.0
      %1069 = vmatpush1.msra.mxu0 0.0
      %1070 = vmatprep.subr.mxu0 0.0
      %1071 = vmatpush1.msra.mxu0 0.0
      %1072 = vmatprep.subr.mxu0 0.0
      %1073 = vmatpush1.msra.mxu0 0.0
      %1074 = vmatprep.subr.mxu0 0.0
      %1075 = vmatpush1.msra.mxu0 0.0
      %1076 = vmatprep.subr.mxu0 0.0
      %1077 = vmatpush1.msra.mxu0 0.0
      %1078 = vmatprep.subr.mxu0 0.0
      %1079 = vmatpush1.msra.mxu0 0.0
      %1080 = vmatprep.subr.mxu0 0.0
      %1081 = vmatpush1.msra.mxu0 0.0
      %1082 = vmatprep.subr.mxu0 %v1050
      %1083 = vmatpush1.msra.mxu0 %v1047
      %1084 = vmatprep.subr.mxu0 0.0
      %1085 = vmatpush2.msra.mxu0 0.0
      %1086 = vmatprep.subr.mxu0 0.0
      %1087 = vmatpush2.msra.mxu0 0.0
      %1088 = vmatprep.subr.mxu0 0.0
      %1089 = vmatpush2.msra.mxu0 0.0
      %1090 = vmatprep.subr.mxu0 0.0
      %1091 = vmatpush2.msra.mxu0 0.0
      %1092 = vmatprep.subr.mxu0 0.0
      %1093 = vmatpush2.msra.mxu0 0.0
      %1094 = vmatprep.subr.mxu0 0.0
      %1095 = vmatpush2.msra.mxu0 0.0
      %1096 = vmatprep.subr.mxu0 0.0
      %1097 = vmatpush2.msra.mxu0 0.0
      %1098 = vmatprep.subr.mxu0 0.0
      %1099 = vmatpush2.msra.mxu0 0.0
      %1100 = vmatprep.subr.mxu0 0.0
      %1101 = vmatpush2.msra.mxu0 0.0
      %1102 = vmatprep.subr.mxu0 0.0
      %1103 = vmatpush2.msra.mxu0 0.0
      %1104 = vmatprep.subr.mxu0 0.0
      %1105 = vmatpush2.msra.mxu0 0.0
      %1106 = vmatprep.subr.mxu0 0.0
      %1107 = vmatpush2.msra.mxu0 0.0
      %1108 = vmatprep.subr.mxu0 0.0
      %1109 = vmatpush2.msra.mxu0 0.0
      %1110 = vmatprep.subr.mxu0 0.0
      %1111 = vmatpush2.msra.mxu0 0.0
      %1112 = vmatprep.subr.mxu0 0.0
      %1113 = vmatpush2.msra.mxu0 0.0
      %1114 = vmatprep.subr.mxu0 0.0
      %1115 = vmatpush2.msra.mxu0 0.0
      %1116 = vmatprep.mubr.f32.mxu0 0.0
      %1117 = vmatmul.mubr.f32.gmra.mxu0 %v1044
      %v1118 = vpop.f32.mrf.mxu0
      %v1119 = vadd.f32 0.0, %v1118
      %v1120 = vpop.f32.mrf.mxu0
      %v1121 = vadd.f32 0.0, %v1120
      %1122 = vdwg.mxu0
      %v1123 = vadd.f32 %v1016, %v1119
      %v1124 = vadd.f32 %v1017, %v1121
      %v1125 = vld [vmem:[%s1] sm:$0x3]
      %1127 = vset.pattern.permute.xlu0 0
      %1128 = vperm.xlu0 %1127, %v1125
      %v1129 = vpop.permute.xlu0 %1128
      %v1131 = vadd.f32 %v1123, %v1129
      %v1132 = vadd.f32 %v1124, %v1129
      %v1133 = vmul.f32 %v1131, 0.5
      %v1134 = vmul.f32 %v1132, 0.5
      %v1135 = vtanh.pop %v1133
      %v1136 = vtanh.pop %v1134
      %v1137 = vmul.f32 %v1135, 4.0
      %v1138 = vmul.f32 %v1136, 4.0
      %v1141 = vcombine.low %v1137, %v1138
      %v1143 = vunpack.c.l.s4 1983009808
      %v1144 = vunpack.c.0.s8 %v1143
      %v1145 = vlaneseq
      %v1146 = vshrl.u32 %v1145, 7
      %v1147 = vsub.s32 %v1144, %v1146
      %v1148 = vrot.slane %v1141, %v1147
      %1150 = vst [vmem:[%s197] sm:$0xf] %v1148
      %p1151 = scmp.lt.s32.totalorder %s15, 1
      %s1152 = scalar_select %p1151, %s15, 1
      %s1153 = smul.addr %s1152, 2
      %s1154 = smul.addr %s1153, 2
      %s1155 = scalar_lea.vmem %s4, %s1154
      // Predicated region
      $region37: #{offset_layer_pallas.1} parent=35 // pred_check
        %p1156 = pneg %p122
      $region38: #{offset_layer_pallas.1} parent=35 // pred_check_branch
        %1158 = sbr.rel (%p1156) target = $region40
      $region39: #{offset_layer_pallas.1} parent=35 // pred_region
        _
      $region40: #{offset_layer_pallas.1} parent=35 // pred_fallthru
        _
    $region36: #{offset_layer_pallas.1} parent=5 // pred_fallthru
      _
    %p1159 = scmp.le.s32.totalorder 2, %s10
    // Predicated region
    $region41: #{offset_layer_pallas.1} parent=5 // pred_check
      %p1160 = pneg %p1159
    $region42: #{offset_layer_pallas.1} parent=5 // pred_check_branch
      %1162 = sbr.rel (%p1160) target = $region44
    $region43: #{offset_layer_pallas.1} parent=5 // pred_region
      %s1163 = ssub.s32 %s10, 2
      // Predicated region
      $region45: #{offset_layer_pallas.1} parent=43 // pred_check
        %p1164 = pneg %p128
      $region46: #{offset_layer_pallas.1} parent=43 // pred_check_branch
        %1166 = sbr.rel (%p1164) target = $region48
      $region47: #{offset_layer_pallas.1} parent=43 // pred_region
        %p1167 = scmp.lt.s32.totalorder %s16, 1
        %s1168 = scalar_select %p1167, %s16, 1
        %s1169 = smul.addr %s1168, 2
        %s1170 = smul.addr %s1169, 2
        %s1171 = scalar_lea.vmem %s4, %s1170
      $region48: #{offset_layer_pallas.1} parent=43 // pred_fallthru
        _
    $region44: #{offset_layer_pallas.1} parent=5 // pred_fallthru
      _
  $region6: #{offset_layer_pallas.1} parent=0 // loop_footer
    %s14 = sadd.s32 1, %s10
  $region7: #{offset_layer_pallas.1} parent=0 // loop_footer_branch
    %9 = sbr.rel target = $region3
  $region8: #{offset_layer_pallas.1} parent=0 // loop_exit
    _

</llo_original>
